<compile_context>
chip_gen: v7x
topology: tpu7x:2x2x1
jax: 0.10.0
libtpu: 0.0.40
codegen_flags: <defaults>
</compile_context>

<pallas_src>
import functools

import jax
import jax.numpy as jnp
from jax import lax
from jax.experimental import pallas as pl
from jax.experimental.pallas import tpu as pltpu

_LANE = 128


def _round_up(x, m):
    return ((x + m - 1) // m) * m


def _vmem_capacity_bytes():
    """Best-effort VMEM capacity query; conservative (v7x, 64 MiB) fallback."""
    try:
        cap = int(pltpu.get_tpu_info().vmem_capacity_bytes)
        if cap > 0:
            return cap
    except Exception:
        pass
    return 64 * 1024 * 1024


def _num_tensorcores():
    """Best-effort TensorCores-per-chip guess (only used for tile sizing)."""
    try:
        kind = jax.devices()[0].device_kind.lower()
    except Exception:
        return 2
    if "v6" in kind or "v5e" in kind or "lite" in kind:
        return 1
    return 2  # v7x (2 TCs), v4/v5p megacore, or unknown -> conservative


def _static_alpha_or_none(alpha):
    """float if alpha is a static/concrete scalar, None if it is traced."""
    try:
        return float(alpha)
    except Exception:
        return None


# ----------------------------------------------------------------------------- kernel

def _edge_attention_body(h_tmp_ref, h_sp_ref, joint_ref, a_sp_ref,
                         alpha, inv_rows, slab_e, unroll):
    """Grid = (batch_tiles, edge_tiles); edge (reduction) axis innermost.

    Lane-dense packed layout (problems on lanes, features on sublanes):
      h_tmp_ref : (D, TILE_B)          temporal hidden state, one column per problem
      h_sp_ref  : (TILE_E, D, TILE_B)  spatial hidden states for this edge tile
      joint_ref : (D, TILE_B) f32      output; VMEM-resident across the edge axis,
                                       used directly as the accumulator
      a_sp_ref  : (TILE_E, D, TILE_B)  output, written every edge step
    """
    e = pl.program_id(1)
    num_e = pl.num_programs(1)

    def prelu(x):
        return jnp.where(x >= 0, x, alpha * x)

    def log_softmax(x, axis):
        m = jnp.max(x, axis=axis, keepdims=True)
        z = x - m
        lse = jnp.log(jnp.sum(jnp.exp(z), axis=axis, keepdims=True))
        return z - lse

    # Temporal branch once per batch tile: initializes the resident joint block.
    @pl.when(e == 0)
    def _():
        ht = h_tmp_ref[...].astype(jnp.float32)               # (D, TILE_B)
        joint_ref[...] = log_softmax(prelu(ht), axis=0) * ht

    tile_e = h_sp_ref.shape[0]
    n_slabs = tile_e // slab_e

    # Edge-slab loop keeps the live vreg set / elementwise temporaries small.
    def slab(i, carry):
        start = pl.multiple_of(i * slab_e, slab_e)
        hs = h_sp_ref[pl.ds(start, slab_e)].astype(jnp.float32)   # (slab_e, D, TILE_B)
        a_sp = log_softmax(prelu(hs), axis=1)                     # softmax over D
        a_sp_ref[pl.ds(start, slab_e)] = a_sp.astype(a_sp_ref.dtype)
        # Zero-padded batch columns have h == 0 -> contribute exactly 0.
        joint_ref[...] += jnp.sum(a_sp * hs, axis=0)              # (D, TILE_B)
        return carry

    lax.fori_loop(0, n_slabs, slab, 0, unroll=unroll)

    @pl.when(e == num_e - 1)
    def _():
        # mean over the (E+1) concatenated rows: static-constant multiply.
        joint_ref[...] *= inv_rows


def _edge_attention_kernel_static(h_tmp_ref, h_sp_ref, joint_ref, a_sp_ref,
                                  *, alpha, inv_rows, slab_e, unroll):
    _edge_attention_body(h_tmp_ref, h_sp_ref, joint_ref, a_sp_ref,
                         alpha, inv_rows, slab_e, unroll)


def _edge_attention_kernel_dynamic(alpha_ref, h_tmp_ref, h_sp_ref, joint_ref, a_sp_ref,
                                   *, inv_rows, slab_e, unroll):
    _edge_attention_body(h_tmp_ref, h_sp_ref, joint_ref, a_sp_ref,
                         alpha_ref[0], inv_rows, slab_e, unroll)


# ----------------------------------------------------------------------------- wrappers

def edge_attention_forward_packed(h_temporal_p, h_spatials_p, alpha,
                                  *, out_dtype=jnp.float32):
    """Packed (lane-dense) EdgeAttention forward — no layout plumbing.

    h_temporal_p : (D, Bp)      Bp must be a multiple of 128
    h_spatials_p : (E, D, Bp)
    alpha        : PReLU negative slope (python float, or traced scalar)
    Returns: joint (D, Bp) f32, a_spatial (E, D, Bp) out_dtype.
    Padded batch columns (h == 0) yield joint == 0 and -log(D)-style a_spatial values.
    """
    E, D, Bp = h_spatials_p.shape
    assert h_temporal_p.shape == (D, Bp)
    assert Bp % _LANE == 0, "pack the batch axis to a multiple of 128 lanes"

    in_item = jnp.dtype(h_spatials_p.dtype).itemsize
    out_item = jnp.dtype(out_dtype).itemsize

    big_vmem = _vmem_capacity_bytes() >= 100 * 1024 * 1024
    budget = (8 if big_vmem else 4) * 1024 * 1024          # in+out block bytes target
    megacore = _num_tensorcores() >= 2

    # ---- tile_b first (contiguous DMA run length), as large as possible ----
    cands = {_LANE, 256, 512, 1024, 2048, Bp}
    if Bp % 2 == 0:
        cands.add(Bp // 2)
    cands = sorted((c for c in cands
                    if 0 < c <= Bp and Bp % c == 0 and c % _LANE == 0),
                   reverse=True)
    tile_b = _LANE
    for c in cands:
        if megacore and Bp >= 2 * _LANE and (Bp // c) < 2:
            continue  # keep >=2 batch tiles so "parallel" shards across 2 TCs
        if D * c * (in_item + out_item) <= budget:
            tile_b = c
            break

    # ---- tile_e from the remaining budget; divisor of E -> no edge padding ----
    per_edge = D * tile_b * (in_item + out_item)
    tile_e_max = max(1, min(E, budget // per_edge))
    tile_e = 1
    for d_ in range(tile_e_max, 0, -1):
        if E % d_ == 0:
            tile_e = d_
            break

    # ---- inner edge-slab size: ~<=16 f32 vregs live per tensor ----
    slab_e = max(1, min(tile_e, (16 * 1024) // max(1, D * tile_b)))
    while tile_e % slab_e:
        slab_e -= 1
    n_slabs = tile_e // slab_e
    unroll = n_slabs <= 8

    grid = (Bp // tile_b, E // tile_e)

    # ---- explicit VMEM budget (double-buffered blocks + headroom for temporaries) ----
    in_block = tile_e * D * tile_b * in_item
    out_block = tile_e * D * tile_b * out_item
    small = D * tile_b * (in_item + 4)
    est = 2 * (in_block + out_block + small) + (4 << 20)
    cap = (64 << 20) if big_vmem else (40 << 20)
    vmem_limit = int(min(max(est, 32 << 20), cap))

    total = Bp * (E + 1) * D
    cost = pl.CostEstimate(
        flops=int(8 * total),
        transcendentals=int(2 * total),
        bytes_accessed=int(E * D * Bp * (in_item + out_item) + D * Bp * (in_item + 4)),
    )

    inv_rows = 1.0 / float(E + 1)

    tmp_spec = pl.BlockSpec((D, tile_b), lambda b, e: (0, b))
    sp_spec = pl.BlockSpec((tile_e, D, tile_b), lambda b, e: (e, 0, b))
    joint_spec = pl.BlockSpec((D, tile_b), lambda b, e: (0, b))
    asp_spec = pl.BlockSpec((tile_e, D, tile_b), lambda b, e: (e, 0, b))

    out_shape = (jax.ShapeDtypeStruct((D, Bp), jnp.float32),
                 jax.ShapeDtypeStruct((E, D, Bp), out_dtype))

    compiler_params = pltpu.CompilerParams(
        dimension_semantics=("parallel", "arbitrary"),
        vmem_limit_bytes=vmem_limit,
    )

    alpha_static = _static_alpha_or_none(alpha)
    if alpha_static is not None:
        kernel = functools.partial(_edge_attention_kernel_static,
                                   alpha=alpha_static, inv_rows=inv_rows,
                                   slab_e=slab_e, unroll=unroll)
        joint_p, a_sp_p = pl.pallas_call(
            kernel, grid=grid, out_shape=out_shape,
            in_specs=[tmp_spec, sp_spec],
            out_specs=(joint_spec, asp_spec),
            compiler_params=compiler_params,
            cost_estimate=cost,
        )(h_temporal_p, h_spatials_p)
    else:
        kernel = functools.partial(_edge_attention_kernel_dynamic,
                                   inv_rows=inv_rows, slab_e=slab_e, unroll=unroll)
        alpha_arr = jnp.asarray(alpha, dtype=jnp.float32).reshape((1,))
        joint_p, a_sp_p = pl.pallas_call(
            kernel, grid=grid, out_shape=out_shape,
            in_specs=[pl.BlockSpec(memory_space=pltpu.MemorySpace.SMEM),
                      tmp_spec, sp_spec],
            out_specs=(joint_spec, asp_spec),
            compiler_params=compiler_params,
            cost_estimate=cost,
        )(alpha_arr, h_temporal_p, h_spatials_p)

    return joint_p, a_sp_p


def edge_attention_forward_batched(h_temporal, h_spatials, alpha,
                                   *, out_dtype=jnp.float32):
    """(B, E, D)-layout convenience wrapper (parity with the PyTorch call pattern).

    For best performance the SRNN loop should keep its hidden states in the packed
    (E, D, B) / (D, B) layout and call `edge_attention_forward_packed` directly; the
    transposes here are a one-off adapter, not part of the kernel.
    """
    if h_temporal.ndim == 3:
        h_temporal = h_temporal[:, 0, :]
    B, E, D = h_spatials.shape
    assert h_temporal.shape == (B, D)

    Bp = _round_up(B, _LANE)
    h_sp_p = jnp.transpose(jnp.pad(h_spatials, ((0, Bp - B), (0, 0), (0, 0))), (1, 2, 0))
    h_tmp_p = jnp.transpose(jnp.pad(h_temporal, ((0, Bp - B), (0, 0))), (1, 0))

    joint_p, a_sp_p = edge_attention_forward_packed(h_tmp_p, h_sp_p, alpha,
                                                    out_dtype=out_dtype)
    joint = jnp.transpose(joint_p, (1, 0))[:B]                # (B, D)
    a_spatial = jnp.transpose(a_sp_p, (2, 0, 1))[:B]          # (B, E, D)
    return joint, a_spatial


def edge_attention_forward(h_temporal, h_spatials, alpha):
    """Single-problem forward matching EdgeAttention.forward exactly.

    h_temporal : (1, D); h_spatials : (E, D)
    returns (joint_weighted_value (D,), a_spatial (E, D))
    """
    joint, a_sp = edge_attention_forward_batched(h_temporal[None], h_spatials[None], alpha)
    return joint[0], a_sp[0]


# ----------------------------------------------------------------------------- test

if __name__ == "__main__":
    D = 32      # human_human_edge_rnn_size
    E = 8       # spatial edges connected to the node
    B = 96      # batched (node, timestep) attention problems (pads to 128 lanes)
    ALPHA = 0.25  # args.alpha (PReLU init)

    key = jax.random.PRNGKey(0)
    k1, k2 = jax.random.split(key)
    h_spatials_b = jax.random.normal(k1, (B, E, D), dtype=jnp.float32)
    h_temporal_b = jax.random.normal(k2, (B, 1, D), dtype=jnp.float32)

    # TODO(synk): temporal_edge_layer / spatial_edge_layer (nn.Linear(1, D)) are declared
    # in EdgeAttention.__init__ but never used in forward(), so they are not wired here.

    def ref_single(h_t, h_s, alpha):
        prelu = lambda x: jnp.where(x >= 0, x, alpha * x)
        a_s = jax.nn.log_softmax(prelu(h_s), axis=1)   # legacy LogSoftmax: dim=1 for 2-D
        a_t = jax.nn.log_softmax(prelu(h_t), axis=1)
        cat = jnp.concatenate([a_s * h_s, a_t * h_t], axis=0)
        return jnp.mean(cat, axis=0), a_s

    joint_ref_b, a_sp_ref_b = jax.vmap(lambda t, s: ref_single(t, s, ALPHA))(
        h_temporal_b, h_spatials_b)

    # 1) Batched convenience path (static alpha -> baked-in kernel).
    joint_b, a_sp_b = edge_attention_forward_batched(h_temporal_b, h_spatials_b, ALPHA)
    jax.block_until_ready((joint_b, a_sp_b))
    assert jnp.allclose(joint_b, joint_ref_b, atol=1e-5, rtol=1e-5)
    assert jnp.allclose(a_sp_b, a_sp_ref_b, atol=1e-5, rtol=1e-5)

    # 2) Packed-layout path (what the SRNN loop should use: no wrapper transposes).
    Bp = _round_up(B, _LANE)
    h_sp_p = jnp.transpose(jnp.pad(h_spatials_b, ((0, Bp - B), (0, 0), (0, 0))), (1, 2, 0))
    h_tmp_p = jnp.transpose(jnp.pad(h_temporal_b[:, 0, :], ((0, Bp - B), (0, 0))), (1, 0))
    joint_p, a_sp_p = edge_attention_forward_packed(h_tmp_p, h_sp_p, ALPHA)
    jax.block_until_ready((joint_p, a_sp_p))
    assert jnp.allclose(jnp.transpose(joint_p, (1, 0))[:B], joint_ref_b, atol=1e-5, rtol=1e-5)
    assert jnp.allclose(jnp.transpose(a_sp_p, (2, 0, 1))[:B], a_sp_ref_b, atol=1e-5, rtol=1e-5)

    # 3) Traced (learned) PReLU slope -> SMEM-scalar kernel path.
    jit_fwd = jax.jit(lambda t, s, a: edge_attention_forward_batched(t, s, a))
    joint_j, a_sp_j = jit_fwd(h_temporal_b, h_spatials_b, jnp.float32(ALPHA))
    jax.block_until_ready((joint_j, a_sp_j))
    assert jnp.allclose(joint_j, joint_ref_b, atol=1e-5, rtol=1e-5)
    assert jnp.allclose(a_sp_j, a_sp_ref_b, atol=1e-5, rtol=1e-5)

    # 4) bf16 a_spatial output (v6e/v7x bandwidth saver); joint stays f32 and exact.
    joint_h, a_sp_h = edge_attention_forward_batched(
        h_temporal_b, h_spatials_b, ALPHA, out_dtype=jnp.bfloat16)
    jax.block_until_ready((joint_h, a_sp_h))
    assert jnp.allclose(joint_h, joint_ref_b, atol=1e-5, rtol=1e-5)
    assert jnp.allclose(a_sp_h.astype(jnp.float32), a_sp_ref_b, atol=2e-2, rtol=2e-2)

    # 5) Single-problem path (exact module signature).
    joint1, a_sp1 = edge_attention_forward(h_temporal_b[0], h_spatials_b[0], ALPHA)
    jax.block_until_ready((joint1, a_sp1))
    joint1_ref, a_sp1_ref = ref_single(h_temporal_b[0], h_spatials_b[0], ALPHA)
    assert jnp.allclose(joint1, joint1_ref, atol=1e-5, rtol=1e-5)
    assert jnp.allclose(a_sp1, a_sp1_ref, atol=1e-5, rtol=1e-5)

    print("KERNEL_OK")
</pallas_src>

<mosaic_0001>
module attributes {stable_mosaic.version = 11 : i64} {
  func.func @_edge_attention_kernel_static(%arg0: i32, %arg1: i32, %arg2: memref<32x128xf32, #tpu.memory_space<vmem>>, %arg3: memref<8x32x128xf32, #tpu.memory_space<vmem>>, %arg4: memref<32x128xf32, #tpu.memory_space<vmem>>, %arg5: memref<8x32x128xf32, #tpu.memory_space<vmem>>) attributes {dimension_semantics = [#tpu.dimension_semantics<parallel>, #tpu.dimension_semantics<arbitrary>], iteration_bounds = array<i64: 1, 1>, scalar_prefetch = 0 : i64, scratch_operands = 0 : i64, tpu.core_type = #tpu.core_type<tc>, window_params = [{transform_indices = @transform_0, window_bounds = array<i64: 32, 128>}, {transform_indices = @transform_1, window_bounds = array<i64: 8, 32, 128>}, {transform_indices = @transform_2, window_bounds = array<i64: 32, 128>}, {transform_indices = @transform_3, window_bounds = array<i64: 8, 32, 128>}]} {
    %c0_i32 = arith.constant 0 : i32
    %0 = arith.cmpi eq, %arg1, %c0_i32 : i32
    %1 = arith.extui %0 : i1 to i32
    %c0_i32_0 = arith.constant 0 : i32
    %2 = arith.cmpi ne, %1, %c0_i32_0 : i32
    scf.if %2 {
      %c0_29 = arith.constant 0 : index
      %c0_30 = arith.constant 0 : index
      %58 = vector.load %arg2[%c0_29, %c0_30] : memref<32x128xf32, #tpu.memory_space<vmem>>, vector<32x128xf32>
      %cst_31 = arith.constant 0.000000e+00 : f32
      %59 = vector.broadcast %cst_31 : f32 to vector<32x128xf32>
      %60 = arith.cmpf oge, %58, %59 : vector<32x128xf32>
      %cst_32 = arith.constant 2.500000e-01 : f32
      %61 = vector.broadcast %cst_32 : f32 to vector<32x128xf32>
      %62 = arith.mulf %61, %58 : vector<32x128xf32>
      %63 = arith.select %60, %58, %62 : vector<32x128xi1>, vector<32x128xf32>
      %cst_33 = arith.constant dense<0xFF800000> : vector<128xf32>
      %64 = vector.multi_reduction <maximumf>, %63, %cst_33 [0] : vector<32x128xf32> to vector<128xf32>
      %65 = vector.shape_cast %64 : vector<128xf32> to vector<1x128xf32>
      %66 = vector.broadcast %65 : vector<1x128xf32> to vector<32x128xf32>
      %67 = arith.subf %63, %66 : vector<32x128xf32>
      %68 = math.exp %67 : vector<32x128xf32>
      %cst_34 = arith.constant dense<0.000000e+00> : vector<128xf32>
      %69 = vector.multi_reduction <add>, %68, %cst_34 [0] : vector<32x128xf32> to vector<128xf32>
      %70 = vector.shape_cast %69 : vector<128xf32> to vector<1x128xf32>
      %71 = math.log %70 : vector<1x128xf32>
      %72 = vector.broadcast %71 : vector<1x128xf32> to vector<32x128xf32>
      %73 = arith.subf %67, %72 : vector<32x128xf32>
      %74 = arith.mulf %73, %58 : vector<32x128xf32>
      %c0_35 = arith.constant 0 : index
      %c0_36 = arith.constant 0 : index
      %75 = vector.load %arg4[%c0_35, %c0_36] : memref<32x128xf32, #tpu.memory_space<vmem>>, vector<32x128xf32>
      tpu.vector_store %arg4[%c0_35, %c0_36], %74 {strides = array<i32>} : memref<32x128xf32, #tpu.memory_space<vmem>>, vector<32x128xf32>,
    } else {
    }
    %c0_i32_1 = arith.constant 0 : i32
    %c4_i32 = arith.constant 4 : i32
    %3 = arith.muli %c0_i32_1, %c4_i32 : i32
    %4 = tpu.assume_multiple %3, 4 : i32
    %5 = arith.index_cast %4 : i32 to index
    %c0 = arith.constant 0 : index
    %c0_2 = arith.constant 0 : index
    %6 = vector.load %arg3[%5, %c0, %c0_2] : memref<8x32x128xf32, #tpu.memory_space<vmem>>, vector<4x32x128xf32>
    %cst = arith.constant 0.000000e+00 : f32
    %7 = vector.broadcast %cst : f32 to vector<4x32x128xf32>
    %8 = arith.cmpf oge, %6, %7 : vector<4x32x128xf32>
    %cst_3 = arith.constant 2.500000e-01 : f32
    %9 = vector.broadcast %cst_3 : f32 to vector<4x32x128xf32>
    %10 = arith.mulf %9, %6 : vector<4x32x128xf32>
    %11 = arith.select %8, %6, %10 : vector<4x32x128xi1>, vector<4x32x128xf32>
    %cst_4 = arith.constant dense<0xFF800000> : vector<4x128xf32>
    %12 = vector.multi_reduction <maximumf>, %11, %cst_4 [1] : vector<4x32x128xf32> to vector<4x128xf32>
    %13 = vector.shape_cast %12 : vector<4x128xf32> to vector<4x1x128xf32>
    %14 = vector.broadcast %13 : vector<4x1x128xf32> to vector<4x32x128xf32>
    %15 = arith.subf %11, %14 : vector<4x32x128xf32>
    %16 = math.exp %15 : vector<4x32x128xf32>
    %cst_5 = arith.constant dense<0.000000e+00> : vector<4x128xf32>
    %17 = vector.multi_reduction <add>, %16, %cst_5 [1] : vector<4x32x128xf32> to vector<4x128xf32>
    %18 = vector.shape_cast %17 : vector<4x128xf32> to vector<4x1x128xf32>
    %19 = math.log %18 : vector<4x1x128xf32>
    %20 = vector.broadcast %19 : vector<4x1x128xf32> to vector<4x32x128xf32>
    %21 = arith.subf %15, %20 : vector<4x32x128xf32>
    %22 = arith.index_cast %4 : i32 to index
    %c0_6 = arith.constant 0 : index
    %c0_7 = arith.constant 0 : index
    %23 = vector.load %arg5[%22, %c0_6, %c0_7] : memref<8x32x128xf32, #tpu.memory_space<vmem>>, vector<4x32x128xf32>
    tpu.vector_store %arg5[%22, %c0_6, %c0_7], %21 {strides = array<i32>} : memref<8x32x128xf32, #tpu.memory_space<vmem>>, vector<4x32x128xf32>,
    %c0_8 = arith.constant 0 : index
    %c0_9 = arith.constant 0 : index
    %24 = vector.load %arg4[%c0_8, %c0_9] : memref<32x128xf32, #tpu.memory_space<vmem>>, vector<32x128xf32>
    %25 = arith.mulf %21, %6 : vector<4x32x128xf32>
    %cst_10 = arith.constant dense<0.000000e+00> : vector<32x128xf32>
    %26 = vector.multi_reduction <add>, %25, %cst_10 [0] : vector<4x32x128xf32> to vector<32x128xf32>
    %27 = arith.addf %24, %26 : vector<32x128xf32>
    %c0_11 = arith.constant 0 : index
    %c0_12 = arith.constant 0 : index
    %28 = vector.load %arg4[%c0_11, %c0_12] : memref<32x128xf32, #tpu.memory_space<vmem>>, vector<32x128xf32>
    tpu.vector_store %arg4[%c0_11, %c0_12], %27 {strides = array<i32>} : memref<32x128xf32, #tpu.memory_space<vmem>>, vector<32x128xf32>,
    %c1_i32 = arith.constant 1 : i32
    %c4_i32_13 = arith.constant 4 : i32
    %29 = arith.muli %c1_i32, %c4_i32_13 : i32
    %30 = tpu.assume_multiple %29, 4 : i32
    %31 = arith.index_cast %30 : i32 to index
    %c0_14 = arith.constant 0 : index
    %c0_15 = arith.constant 0 : index
    %32 = vector.load %arg3[%31, %c0_14, %c0_15] : memref<8x32x128xf32, #tpu.memory_space<vmem>>, vector<4x32x128xf32>
    %cst_16 = arith.constant 0.000000e+00 : f32
    %33 = vector.broadcast %cst_16 : f32 to vector<4x32x128xf32>
    %34 = arith.cmpf oge, %32, %33 : vector<4x32x128xf32>
    %cst_17 = arith.constant 2.500000e-01 : f32
    %35 = vector.broadcast %cst_17 : f32 to vector<4x32x128xf32>
    %36 = arith.mulf %35, %32 : vector<4x32x128xf32>
    %37 = arith.select %34, %32, %36 : vector<4x32x128xi1>, vector<4x32x128xf32>
    %cst_18 = arith.constant dense<0xFF800000> : vector<4x128xf32>
    %38 = vector.multi_reduction <maximumf>, %37, %cst_18 [1] : vector<4x32x128xf32> to vector<4x128xf32>
    %39 = vector.shape_cast %38 : vector<4x128xf32> to vector<4x1x128xf32>
    %40 = vector.broadcast %39 : vector<4x1x128xf32> to vector<4x32x128xf32>
    %41 = arith.subf %37, %40 : vector<4x32x128xf32>
    %42 = math.exp %41 : vector<4x32x128xf32>
    %cst_19 = arith.constant dense<0.000000e+00> : vector<4x128xf32>
    %43 = vector.multi_reduction <add>, %42, %cst_19 [1] : vector<4x32x128xf32> to vector<4x128xf32>
    %44 = vector.shape_cast %43 : vector<4x128xf32> to vector<4x1x128xf32>
    %45 = math.log %44 : vector<4x1x128xf32>
    %46 = vector.broadcast %45 : vector<4x1x128xf32> to vector<4x32x128xf32>
    %47 = arith.subf %41, %46 : vector<4x32x128xf32>
    %48 = arith.index_cast %30 : i32 to index
    %c0_20 = arith.constant 0 : index
    %c0_21 = arith.constant 0 : index
    %49 = vector.load %arg5[%48, %c0_20, %c0_21] : memref<8x32x128xf32, #tpu.memory_space<vmem>>, vector<4x32x128xf32>
    tpu.vector_store %arg5[%48, %c0_20, %c0_21], %47 {strides = array<i32>} : memref<8x32x128xf32, #tpu.memory_space<vmem>>, vector<4x32x128xf32>,
    %c0_22 = arith.constant 0 : index
    %c0_23 = arith.constant 0 : index
    %50 = vector.load %arg4[%c0_22, %c0_23] : memref<32x128xf32, #tpu.memory_space<vmem>>, vector<32x128xf32>
    %51 = arith.mulf %47, %32 : vector<4x32x128xf32>
    %cst_24 = arith.constant dense<0.000000e+00> : vector<32x128xf32>
    %52 = vector.multi_reduction <add>, %51, %cst_24 [0] : vector<4x32x128xf32> to vector<32x128xf32>
    %53 = arith.addf %50, %52 : vector<32x128xf32>
    %c0_25 = arith.constant 0 : index
    %c0_26 = arith.constant 0 : index
    %54 = vector.load %arg4[%c0_25, %c0_26] : memref<32x128xf32, #tpu.memory_space<vmem>>, vector<32x128xf32>
    tpu.vector_store %arg4[%c0_25, %c0_26], %53 {strides = array<i32>} : memref<32x128xf32, #tpu.memory_space<vmem>>, vector<32x128xf32>,
    %c2_i32 = arith.constant 2 : i32
    %c0_i32_27 = arith.constant 0 : i32
    %55 = arith.cmpi eq, %arg1, %c0_i32_27 : i32
    %56 = arith.extui %55 : i1 to i32
    %c0_i32_28 = arith.constant 0 : i32
    %57 = arith.cmpi ne, %56, %c0_i32_28 : i32
    scf.if %57 {
      %c0_29 = arith.constant 0 : index
      %c0_30 = arith.constant 0 : index
      %58 = vector.load %arg4[%c0_29, %c0_30] : memref<32x128xf32, #tpu.memory_space<vmem>>, vector<32x128xf32>
      %cst_31 = arith.constant 0.111111112 : f32
      %59 = vector.broadcast %cst_31 : f32 to vector<32x128xf32>
      %60 = arith.mulf %58, %59 : vector<32x128xf32>
      %c0_32 = arith.constant 0 : index
      %c0_33 = arith.constant 0 : index
      %61 = vector.load %arg4[%c0_32, %c0_33] : memref<32x128xf32, #tpu.memory_space<vmem>>, vector<32x128xf32>
      tpu.vector_store %arg4[%c0_32, %c0_33], %60 {strides = array<i32>} : memref<32x128xf32, #tpu.memory_space<vmem>>, vector<32x128xf32>,
    } else {
    }
    return
  }
  func.func @transform_0(%arg0: i32, %arg1: i32) -> (i32, i32) {
    %c0_i32 = arith.constant 0 : i32
    %c0_i32_0 = arith.constant 0 : i32
    return %c0_i32, %arg0 : i32, i32
  }
  func.func @transform_1(%arg0: i32, %arg1: i32) -> (i32, i32, i32) {
    %c0_i32 = arith.constant 0 : i32
    %c0_i32_0 = arith.constant 0 : i32
    return %arg1, %c0_i32, %arg0 : i32, i32, i32
  }
  func.func @transform_2(%arg0: i32, %arg1: i32) -> (i32, i32) {
    %c0_i32 = arith.constant 0 : i32
    %c0_i32_0 = arith.constant 0 : i32
    return %c0_i32, %arg0 : i32, i32
  }
  func.func @transform_3(%arg0: i32, %arg1: i32) -> (i32, i32, i32) {
    %c0_i32 = arith.constant 0 : i32
    %c0_i32_0 = arith.constant 0 : i32
    return %arg1, %c0_i32, %arg0 : i32, i32, i32
  }
}

</mosaic_0001>

<llo_original>
// kernel: tpu_custom_call.1
$region0: #{tpu_custom_call.1}
  #allocation0 [shape = 'u32[]', space=smem, size = 0x4, offset = 0x4, fixed_abs, tag = 'smem constant byte address 0x4 - core index']
  #allocation1 [shape = 'u32[144,128]{1,0:T(1,128)}', space=vmem, size = 0x12000, scoped, tag = 'internal scratch']
  %s0 = inlined_call_operand.hbm [shape: f32[32,128], index: 0, kind: input, shape index: {}]
  %s1 = inlined_call_operand.hbm [shape: f32[8,32,128], index: 1, kind: input, shape index: {}]
  %s2 = inlined_call_operand.hbm [shape: f32[32,128], index: 2, kind: output, shape index: {0}]
  %s3 = inlined_call_operand.hbm [shape: f32[8,32,128], index: 3, kind: output, shape index: {1}]
  %4 = xla_tuple %s2, %s3
  %s5 = sld [smem:[#allocation0]]
  $region42: #{tpu_custom_call.1} parent=0
    _
  %s7 = ssub.s32 1, %s5
  %s8 = scalar_select 0, %s7, %s5
  $region1: #{tpu_custom_call.1} parent=0
    #allocation2 [shape = 'u8[16384]{0}', space=vmem, size = 0x4000, scoped, tag = 'input window, operand 0, single buffered']
    #allocation3 [shape = 's32[1]{0}', space=sflag, size = 0x4, scoped, tag = 'scoped memory for tpu_custom_call.1']
    #allocation4 [shape = 's32[1]{0}', space=sflag, size = 0x4, scoped, tag = 'scoped memory for tpu_custom_call.1']
    #allocation5 [shape = 'u8[131072]{0}', space=vmem, size = 0x20000, scoped, tag = 'input window, operand 1, single buffered']
    #allocation6 [shape = 's32[1]{0}', space=sflag, size = 0x4, scoped, tag = 'scoped memory for tpu_custom_call.1']
    #allocation7 [shape = 'u8[16384]{0}', space=vmem, size = 0x4000, scoped, tag = 'output window, operand 0, single buffered']
    #allocation8 [shape = 'u8[131072]{0}', space=vmem, size = 0x20000, scoped, tag = 'output window, operand 1, single buffered']
    #allocation9 [shape = 's32[1]{0}', space=sflag, size = 0x4, scoped, tag = 'scoped memory for tpu_custom_call.1']
    %9 = vsyncpa [#allocation3], 0
    %10 = vsyncpa [#allocation6], 0
    %11 = vsyncpa [#allocation4], 0
    %12 = vsyncpa [#allocation9], 0
    // Predicated region
    $region2: #{tpu_custom_call.1} parent=1 // pred_check
      _
    $region3: #{tpu_custom_call.1} parent=1 // pred_check_branch
      %14 = sbr.rel (0) target = $region5
    $region4: #{tpu_custom_call.1} parent=1 // pred_region
      %s16 = ssub.s32 512, 512
      %17 = vsyncadd [#allocation3], %s16
      %s18 = sshll.u32 [#allocation2], 4
      %s19 = int_to_ptr.vmem [resolvable:$true] %s18
      %24 = dma.hbm_to_vmem [thread:$0]  %s0, 512, %s19, [#allocation3], 128, 128, 8
    $region5: #{tpu_custom_call.1} parent=1 // pred_fallthru
      _
    // Predicated region
    $region6: #{tpu_custom_call.1} parent=1 // pred_check
      _
    $region7: #{tpu_custom_call.1} parent=1 // pred_check_branch
      %26 = sbr.rel (0) target = $region9
    $region8: #{tpu_custom_call.1} parent=1 // pred_region
      %s28 = ssub.s32 4096, 4096
      %29 = vsyncadd [#allocation6], %s28
      %s30 = sshll.u32 [#allocation5], 4
      %s31 = int_to_ptr.vmem [resolvable:$true] %s30
      %36 = dma.hbm_to_vmem [thread:$0]  %s1, 4096, %s31, [#allocation6], 128, 128, 8
    $region9: #{tpu_custom_call.1} parent=1 // pred_fallthru
      _
    // Predicated region
    $region10: #{tpu_custom_call.1} parent=1 // pred_check
      _
    $region11: #{tpu_custom_call.1} parent=1 // pred_check_branch
      %38 = sbr.rel (0) target = $region13
    $region12: #{tpu_custom_call.1} parent=1 // pred_region
      %39 = dma.done [#allocation3], 512
    $region13: #{tpu_custom_call.1} parent=1 // pred_fallthru
      _
    // Predicated region
    $region14: #{tpu_custom_call.1} parent=1 // pred_check
      _
    $region15: #{tpu_custom_call.1} parent=1 // pred_check_branch
      %41 = sbr.rel (0) target = $region17
    $region16: #{tpu_custom_call.1} parent=1 // pred_region
      %42 = dma.done [#allocation6], 4096
    $region17: #{tpu_custom_call.1} parent=1 // pred_fallthru
      _
    %p43 = scmp.eq.s32.totalorder 0, 0
    // Predicated region
    $region18: #{tpu_custom_call.1} parent=1 // pred_check
      %p44 = pneg %p43
    $region19: #{tpu_custom_call.1} parent=1 // pred_check_branch
      %46 = sbr.rel (%p44) target = $region21
    $region20: #{tpu_custom_call.1} parent=1 // pred_region
      %v47 = vld [vmem:[#allocation2] sm:$0xff]
      %v48 = vld [vmem:[#allocation2 + $0x8] sm:$0xff]
      %v49 = vld [vmem:[#allocation2 + $0x10] sm:$0xff]
      %v50 = vld [vmem:[#allocation2 + $0x18] sm:$0xff]
      %vm51 = vcmp.ge.f32.partialorder %v47, 0.0
      %vm52 = vcmp.ge.f32.partialorder %v48, 0.0
      %vm53 = vcmp.ge.f32.partialorder %v49, 0.0
      %vm54 = vcmp.ge.f32.partialorder %v50, 0.0
      %v55 = vmul.f32 %v47, 0.25
      %v56 = vmul.f32 %v48, 0.25
      %v57 = vmul.f32 %v49, 0.25
      %v58 = vmul.f32 %v50, 0.25
      %v59 = vsel %vm51, %v47, %v55
      %v60 = vsel %vm52, %v48, %v56
      %v61 = vsel %vm53, %v49, %v57
      %v62 = vsel %vm54, %v50, %v58
      %v63 = vmax.f32 %v59, %v60
      %v64 = vmax.f32 %v61, %v62
      %v65 = vmax.f32 %v63, %v64
      %v66 = vrot.slane %v65, 4
      %v67 = vmax.f32 %v65, %v66
      %v68 = vrot.slane %v67, 2
      %v69 = vmax.f32 %v67, %v68
      %v70 = vrot.slane %v69, 1
      %v71 = vmax.f32 %v69, %v70
      %v72 = vsub.f32 %v59, %v71
      %v73 = vsub.f32 %v60, %v71
      %v74 = vsub.f32 %v61, %v71
      %v75 = vsub.f32 %v62, %v71
      %v76 = vmul.f32 %v72, 1.442695
      %v77 = vpow.pop %v76
      %v78 = vmul.f32 %v73, 1.442695
      %v79 = vpow.pop %v78
      %v80 = vmul.f32 %v74, 1.442695
      %v81 = vpow.pop %v80
      %v82 = vmul.f32 %v75, 1.442695
      %v83 = vpow.pop %v82
      %v84 = vadd.f32 %v77, %v79
      %v85 = vadd.f32 %v84, %v81
      %v86 = vadd.f32 %v85, %v83
      %v87 = vrot.slane %v86, 4
      %v88 = vadd.f32 %v86, %v87
      %v89 = vrot.slane %v88, 2
      %v90 = vadd.f32 %v88, %v89
      %v91 = vrot.slane %v90, 1
      %v92 = vadd.f32 %v90, %v91
      %v93 = vlog2.pop %v92
      %v94 = vmul.f32 %v93, 0.6931472
      %v95 = vsub.f32 %v72, %v94
      %v96 = vsub.f32 %v73, %v94
      %v97 = vsub.f32 %v74, %v94
      %v98 = vsub.f32 %v75, %v94
      %v99 = vmul.f32 %v95, %v47
      %v100 = vmul.f32 %v96, %v48
      %v101 = vmul.f32 %v97, %v49
      %v102 = vmul.f32 %v98, %v50
      %103 = vst [vmem:[#allocation7] sm:$0xff] %v99
      %104 = vst [vmem:[#allocation7 + $0x8] sm:$0xff] %v100
      %105 = vst [vmem:[#allocation7 + $0x10] sm:$0xff] %v101
      %106 = vst [vmem:[#allocation7 + $0x18] sm:$0xff] %v102
    $region21: #{tpu_custom_call.1} parent=1 // pred_fallthru
      _
    %s107 = smul.u32 0, 32
    %s108 = scalar_lea.vmem [#allocation5], %s107
    %v109 = vld [vmem:[%s108] sm:$0xff]
    %v110 = vld [vmem:[%s108 + $0x8] sm:$0xff]
    %v111 = vld [vmem:[%s108 + $0x10] sm:$0xff]
    %v112 = vld [vmem:[%s108 + $0x18] sm:$0xff]
    %v113 = vld [vmem:[%s108 + $0x20] sm:$0xff]
    %v114 = vld [vmem:[%s108 + $0x28] sm:$0xff]
    %v115 = vld [vmem:[%s108 + $0x30] sm:$0xff]
    %v116 = vld [vmem:[%s108 + $0x38] sm:$0xff]
    %v117 = vld [vmem:[%s108 + $0x40] sm:$0xff]
    %v118 = vld [vmem:[%s108 + $0x48] sm:$0xff]
    %v119 = vld [vmem:[%s108 + $0x50] sm:$0xff]
    %v120 = vld [vmem:[%s108 + $0x58] sm:$0xff]
    %v121 = vld [vmem:[%s108 + $0x60] sm:$0xff]
    %v122 = vld [vmem:[%s108 + $0x68] sm:$0xff]
    %v123 = vld [vmem:[%s108 + $0x70] sm:$0xff]
    %v124 = vld [vmem:[%s108 + $0x78] sm:$0xff]
    %vm125 = vcmp.ge.f32.partialorder %v109, 0.0
    %vm126 = vcmp.ge.f32.partialorder %v110, 0.0
    %vm127 = vcmp.ge.f32.partialorder %v111, 0.0
    %vm128 = vcmp.ge.f32.partialorder %v112, 0.0
    %vm129 = vcmp.ge.f32.partialorder %v113, 0.0
    %vm130 = vcmp.ge.f32.partialorder %v114, 0.0
    %vm131 = vcmp.ge.f32.partialorder %v115, 0.0
    %vm132 = vcmp.ge.f32.partialorder %v116, 0.0
    %vm133 = vcmp.ge.f32.partialorder %v117, 0.0
    %vm134 = vcmp.ge.f32.partialorder %v118, 0.0
    %vm135 = vcmp.ge.f32.partialorder %v119, 0.0
    %vm136 = vcmp.ge.f32.partialorder %v120, 0.0
    %vm137 = vcmp.ge.f32.partialorder %v121, 0.0
    %vm138 = vcmp.ge.f32.partialorder %v122, 0.0
    %vm139 = vcmp.ge.f32.partialorder %v123, 0.0
    %vm140 = vcmp.ge.f32.partialorder %v124, 0.0
    %v141 = vmul.f32 %v109, 0.25
    %v142 = vmul.f32 %v110, 0.25
    %v143 = vmul.f32 %v111, 0.25
    %v144 = vmul.f32 %v112, 0.25
    %v145 = vmul.f32 %v113, 0.25
    %v146 = vmul.f32 %v114, 0.25
    %v147 = vmul.f32 %v115, 0.25
    %v148 = vmul.f32 %v116, 0.25
    %v149 = vmul.f32 %v117, 0.25
    %v150 = vmul.f32 %v118, 0.25
    %v151 = vmul.f32 %v119, 0.25
    %v152 = vmul.f32 %v120, 0.25
    %v153 = vmul.f32 %v121, 0.25
    %v154 = vmul.f32 %v122, 0.25
    %v155 = vmul.f32 %v123, 0.25
    %v156 = vmul.f32 %v124, 0.25
    %v157 = vsel %vm125, %v109, %v141
    %v158 = vsel %vm126, %v110, %v142
    %v159 = vsel %vm127, %v111, %v143
    %v160 = vsel %vm128, %v112, %v144
    %v161 = vsel %vm129, %v113, %v145
    %v162 = vsel %vm130, %v114, %v146
    %v163 = vsel %vm131, %v115, %v147
    %v164 = vsel %vm132, %v116, %v148
    %v165 = vsel %vm133, %v117, %v149
    %v166 = vsel %vm134, %v118, %v150
    %v167 = vsel %vm135, %v119, %v151
    %v168 = vsel %vm136, %v120, %v152
    %v169 = vsel %vm137, %v121, %v153
    %v170 = vsel %vm138, %v122, %v154
    %v171 = vsel %vm139, %v123, %v155
    %v172 = vsel %vm140, %v124, %v156
    %v173 = vmax.f32 %v157, %v158
    %v174 = vmax.f32 %v173, %v159
    %v175 = vmax.f32 %v174, %v160
    %v176 = vrot.slane %v175, 4
    %v177 = vmax.f32 %v175, %v176
    %v178 = vrot.slane %v177, 2
    %v179 = vmax.f32 %v177, %v178
    %v180 = vrot.slane %v179, 1
    %v181 = vmax.f32 %v179, %v180
    %v182 = vmax.f32 %v161, %v162
    %v183 = vmax.f32 %v182, %v163
    %v184 = vmax.f32 %v183, %v164
    %v185 = vrot.slane %v184, 4
    %v186 = vmax.f32 %v184, %v185
    %v187 = vrot.slane %v186, 2
    %v188 = vmax.f32 %v186, %v187
    %v189 = vrot.slane %v188, 1
    %v190 = vmax.f32 %v188, %v189
    %v191 = vmax.f32 %v165, %v166
    %v192 = vmax.f32 %v191, %v167
    %v193 = vmax.f32 %v192, %v168
    %v194 = vrot.slane %v193, 4
    %v195 = vmax.f32 %v193, %v194
    %v196 = vrot.slane %v195, 2
    %v197 = vmax.f32 %v195, %v196
    %v198 = vrot.slane %v197, 1
    %v199 = vmax.f32 %v197, %v198
    %v200 = vmax.f32 %v169, %v170
    %v201 = vmax.f32 %v200, %v171
    %v202 = vmax.f32 %v201, %v172
    %v203 = vrot.slane %v202, 4
    %v204 = vmax.f32 %v202, %v203
    %v205 = vrot.slane %v204, 2
    %v206 = vmax.f32 %v204, %v205
    %v207 = vrot.slane %v206, 1
    %v208 = vmax.f32 %v206, %v207
    %v209 = vsub.f32 %v157, %v181
    %v210 = vsub.f32 %v158, %v181
    %v211 = vsub.f32 %v159, %v181
    %v212 = vsub.f32 %v160, %v181
    %v213 = vsub.f32 %v161, %v190
    %v214 = vsub.f32 %v162, %v190
    %v215 = vsub.f32 %v163, %v190
    %v216 = vsub.f32 %v164, %v190
    %v217 = vsub.f32 %v165, %v199
    %v218 = vsub.f32 %v166, %v199
    %v219 = vsub.f32 %v167, %v199
    %v220 = vsub.f32 %v168, %v199
    %v221 = vsub.f32 %v169, %v208
    %v222 = vsub.f32 %v170, %v208
    %v223 = vsub.f32 %v171, %v208
    %v224 = vsub.f32 %v172, %v208
    %v225 = vmul.f32 %v209, 1.442695
    %v226 = vpow.pop %v225
    %v227 = vmul.f32 %v210, 1.442695
    %v228 = vpow.pop %v227
    %v229 = vmul.f32 %v211, 1.442695
    %v230 = vpow.pop %v229
    %v231 = vmul.f32 %v212, 1.442695
    %v232 = vpow.pop %v231
    %v233 = vmul.f32 %v213, 1.442695
    %v234 = vpow.pop %v233
    %v235 = vmul.f32 %v214, 1.442695
    %v236 = vpow.pop %v235
    %v237 = vmul.f32 %v215, 1.442695
    %v238 = vpow.pop %v237
    %v239 = vmul.f32 %v216, 1.442695
    %v240 = vpow.pop %v239
    %v241 = vmul.f32 %v217, 1.442695
    %v242 = vpow.pop %v241
    %v243 = vmul.f32 %v218, 1.442695
    %v244 = vpow.pop %v243
    %v245 = vmul.f32 %v219, 1.442695
    %v246 = vpow.pop %v245
    %v247 = vmul.f32 %v220, 1.442695
    %v248 = vpow.pop %v247
    %v249 = vmul.f32 %v221, 1.442695
    %v250 = vpow.pop %v249
    %v251 = vmul.f32 %v222, 1.442695
    %v252 = vpow.pop %v251
    %v253 = vmul.f32 %v223, 1.442695
    %v254 = vpow.pop %v253
    %v255 = vmul.f32 %v224, 1.442695
    %v256 = vpow.pop %v255
    %v257 = vadd.f32 %v226, %v228
    %v258 = vadd.f32 %v257, %v230
    %v259 = vadd.f32 %v258, %v232
    %v260 = vrot.slane %v259, 4
    %v261 = vadd.f32 %v259, %v260
    %v262 = vrot.slane %v261, 2
    %v263 = vadd.f32 %v261, %v262
    %v264 = vrot.slane %v263, 1
    %v265 = vadd.f32 %v263, %v264
    %v266 = vadd.f32 %v234, %v236
    %v267 = vadd.f32 %v266, %v238
    %v268 = vadd.f32 %v267, %v240
    %v269 = vrot.slane %v268, 4
    %v270 = vadd.f32 %v268, %v269
    %v271 = vrot.slane %v270, 2
    %v272 = vadd.f32 %v270, %v271
    %v273 = vrot.slane %v272, 1
    %v274 = vadd.f32 %v272, %v273
    %v275 = vadd.f32 %v242, %v244
    %v276 = vadd.f32 %v275, %v246
    %v277 = vadd.f32 %v276, %v248
    %v278 = vrot.slane %v277, 4
    %v279 = vadd.f32 %v277, %v278
    %v280 = vrot.slane %v279, 2
    %v281 = vadd.f32 %v279, %v280
    %v282 = vrot.slane %v281, 1
    %v283 = vadd.f32 %v281, %v282
    %v284 = vadd.f32 %v250, %v252
    %v285 = vadd.f32 %v284, %v254
    %v286 = vadd.f32 %v285, %v256
    %v287 = vrot.slane %v286, 4
    %v288 = vadd.f32 %v286, %v287
    %v289 = vrot.slane %v288, 2
    %v290 = vadd.f32 %v288, %v289
    %v291 = vrot.slane %v290, 1
    %v292 = vadd.f32 %v290, %v291
    %v293 = vlog2.pop %v265
    %v294 = vmul.f32 %v293, 0.6931472
    %v295 = vlog2.pop %v274
    %v296 = vmul.f32 %v295, 0.6931472
    %v297 = vlog2.pop %v283
    %v298 = vmul.f32 %v297, 0.6931472
    %v299 = vlog2.pop %v292
    %v300 = vmul.f32 %v299, 0.6931472
    %v301 = vsub.f32 %v209, %v294
    %v302 = vsub.f32 %v210, %v294
    %v303 = vsub.f32 %v211, %v294
    %v304 = vsub.f32 %v212, %v294
    %v305 = vsub.f32 %v213, %v296
    %v306 = vsub.f32 %v214, %v296
    %v307 = vsub.f32 %v215, %v296
    %v308 = vsub.f32 %v216, %v296
    %v309 = vsub.f32 %v217, %v298
    %v310 = vsub.f32 %v218, %v298
    %v311 = vsub.f32 %v219, %v298
    %v312 = vsub.f32 %v220, %v298
    %v313 = vsub.f32 %v221, %v300
    %v314 = vsub.f32 %v222, %v300
    %v315 = vsub.f32 %v223, %v300
    %v316 = vsub.f32 %v224, %v300
    %s317 = scalar_lea.vmem [#allocation8], %s107
    %318 = vst [vmem:[%s317] sm:$0xff] %v301
    %319 = vst [vmem:[%s317 + $0x8] sm:$0xff] %v302
    %320 = vst [vmem:[%s317 + $0x10] sm:$0xff] %v303
    %321 = vst [vmem:[%s317 + $0x18] sm:$0xff] %v304
    %322 = vst [vmem:[%s317 + $0x20] sm:$0xff] %v305
    %323 = vst [vmem:[%s317 + $0x28] sm:$0xff] %v306
    %324 = vst [vmem:[%s317 + $0x30] sm:$0xff] %v307
    %325 = vst [vmem:[%s317 + $0x38] sm:$0xff] %v308
    %326 = vst [vmem:[%s317 + $0x40] sm:$0xff] %v309
    %327 = vst [vmem:[%s317 + $0x48] sm:$0xff] %v310
    %328 = vst [vmem:[%s317 + $0x50] sm:$0xff] %v311
    %329 = vst [vmem:[%s317 + $0x58] sm:$0xff] %v312
    %330 = vst [vmem:[%s317 + $0x60] sm:$0xff] %v313
    %331 = vst [vmem:[%s317 + $0x68] sm:$0xff] %v314
    %332 = vst [vmem:[%s317 + $0x70] sm:$0xff] %v315
    %333 = vst [vmem:[%s317 + $0x78] sm:$0xff] %v316
    %v334 = vld [vmem:[#allocation7] sm:$0xff]
    %v335 = vld [vmem:[#allocation7 + $0x8] sm:$0xff]
    %v336 = vld [vmem:[#allocation7 + $0x10] sm:$0xff]
    %v337 = vld [vmem:[#allocation7 + $0x18] sm:$0xff]
    %v338 = vmul.f32 %v301, %v109
    %v339 = vmul.f32 %v302, %v110
    %v340 = vmul.f32 %v303, %v111
    %v341 = vmul.f32 %v304, %v112
    %v342 = vmul.f32 %v305, %v113
    %v343 = vmul.f32 %v306, %v114
    %v344 = vmul.f32 %v307, %v115
    %v345 = vmul.f32 %v308, %v116
    %v346 = vmul.f32 %v309, %v117
    %v347 = vmul.f32 %v310, %v118
    %v348 = vmul.f32 %v311, %v119
    %v349 = vmul.f32 %v312, %v120
    %v350 = vmul.f32 %v313, %v121
    %v351 = vmul.f32 %v314, %v122
    %v352 = vmul.f32 %v315, %v123
    %v353 = vmul.f32 %v316, %v124
    %v354 = vadd.f32 %v338, %v342
    %v355 = vadd.f32 %v354, %v346
    %v356 = vadd.f32 %v355, %v350
    %v357 = vadd.f32 %v339, %v343
    %v358 = vadd.f32 %v357, %v347
    %v359 = vadd.f32 %v358, %v351
    %v360 = vadd.f32 %v340, %v344
    %v361 = vadd.f32 %v360, %v348
    %v362 = vadd.f32 %v361, %v352
    %v363 = vadd.f32 %v341, %v345
    %v364 = vadd.f32 %v363, %v349
    %v365 = vadd.f32 %v364, %v353
    %v366 = vadd.f32 %v334, %v356
    %v367 = vadd.f32 %v335, %v359
    %v368 = vadd.f32 %v336, %v362
    %v369 = vadd.f32 %v337, %v365
    %370 = vst [vmem:[#allocation7] sm:$0xff] %v366
    %371 = vst [vmem:[#allocation7 + $0x8] sm:$0xff] %v367
    %372 = vst [vmem:[#allocation7 + $0x10] sm:$0xff] %v368
    %373 = vst [vmem:[#allocation7 + $0x18] sm:$0xff] %v369
    %s374 = smul.u32 4, 32
    %s375 = scalar_lea.vmem [#allocation5], %s374
    %v376 = vld [vmem:[%s375] sm:$0xff]
    %v377 = vld [vmem:[%s375 + $0x8] sm:$0xff]
    %v378 = vld [vmem:[%s375 + $0x10] sm:$0xff]
    %v379 = vld [vmem:[%s375 + $0x18] sm:$0xff]
    %v380 = vld [vmem:[%s375 + $0x20] sm:$0xff]
    %v381 = vld [vmem:[%s375 + $0x28] sm:$0xff]
    %v382 = vld [vmem:[%s375 + $0x30] sm:$0xff]
    %v383 = vld [vmem:[%s375 + $0x38] sm:$0xff]
    %v384 = vld [vmem:[%s375 + $0x40] sm:$0xff]
    %v385 = vld [vmem:[%s375 + $0x48] sm:$0xff]
    %v386 = vld [vmem:[%s375 + $0x50] sm:$0xff]
    %v387 = vld [vmem:[%s375 + $0x58] sm:$0xff]
    %v388 = vld [vmem:[%s375 + $0x60] sm:$0xff]
    %v389 = vld [vmem:[%s375 + $0x68] sm:$0xff]
    %v390 = vld [vmem:[%s375 + $0x70] sm:$0xff]
    %v391 = vld [vmem:[%s375 + $0x78] sm:$0xff]
    %vm392 = vcmp.ge.f32.partialorder %v376, 0.0
    %vm393 = vcmp.ge.f32.partialorder %v377, 0.0
    %vm394 = vcmp.ge.f32.partialorder %v378, 0.0
    %vm395 = vcmp.ge.f32.partialorder %v379, 0.0
    %vm396 = vcmp.ge.f32.partialorder %v380, 0.0
    %vm397 = vcmp.ge.f32.partialorder %v381, 0.0
    %vm398 = vcmp.ge.f32.partialorder %v382, 0.0
    %vm399 = vcmp.ge.f32.partialorder %v383, 0.0
    %vm400 = vcmp.ge.f32.partialorder %v384, 0.0
    %vm401 = vcmp.ge.f32.partialorder %v385, 0.0
    %vm402 = vcmp.ge.f32.partialorder %v386, 0.0
    %vm403 = vcmp.ge.f32.partialorder %v387, 0.0
    %vm404 = vcmp.ge.f32.partialorder %v388, 0.0
    %vm405 = vcmp.ge.f32.partialorder %v389, 0.0
    %vm406 = vcmp.ge.f32.partialorder %v390, 0.0
    %vm407 = vcmp.ge.f32.partialorder %v391, 0.0
    %v408 = vmul.f32 %v376, 0.25
    %v409 = vmul.f32 %v377, 0.25
    %v410 = vmul.f32 %v378, 0.25
    %v411 = vmul.f32 %v379, 0.25
    %v412 = vmul.f32 %v380, 0.25
    %v413 = vmul.f32 %v381, 0.25
    %v414 = vmul.f32 %v382, 0.25
    %v415 = vmul.f32 %v383, 0.25
    %v416 = vmul.f32 %v384, 0.25
    %v417 = vmul.f32 %v385, 0.25
    %v418 = vmul.f32 %v386, 0.25
    %v419 = vmul.f32 %v387, 0.25
    %v420 = vmul.f32 %v388, 0.25
    %v421 = vmul.f32 %v389, 0.25
    %v422 = vmul.f32 %v390, 0.25
    %v423 = vmul.f32 %v391, 0.25
    %v424 = vsel %vm392, %v376, %v408
    %v425 = vsel %vm393, %v377, %v409
    %v426 = vsel %vm394, %v378, %v410
    %v427 = vsel %vm395, %v379, %v411
    %v428 = vsel %vm396, %v380, %v412
    %v429 = vsel %vm397, %v381, %v413
    %v430 = vsel %vm398, %v382, %v414
    %v431 = vsel %vm399, %v383, %v415
    %v432 = vsel %vm400, %v384, %v416
    %v433 = vsel %vm401, %v385, %v417
    %v434 = vsel %vm402, %v386, %v418
    %v435 = vsel %vm403, %v387, %v419
    %v436 = vsel %vm404, %v388, %v420
    %v437 = vsel %vm405, %v389, %v421
    %v438 = vsel %vm406, %v390, %v422
    %v439 = vsel %vm407, %v391, %v423
    %v440 = vmax.f32 %v424, %v425
    %v441 = vmax.f32 %v440, %v426
    %v442 = vmax.f32 %v441, %v427
    %v443 = vrot.slane %v442, 4
    %v444 = vmax.f32 %v442, %v443
    %v445 = vrot.slane %v444, 2
    %v446 = vmax.f32 %v444, %v445
    %v447 = vrot.slane %v446, 1
    %v448 = vmax.f32 %v446, %v447
    %v449 = vmax.f32 %v428, %v429
    %v450 = vmax.f32 %v449, %v430
    %v451 = vmax.f32 %v450, %v431
    %v452 = vrot.slane %v451, 4
    %v453 = vmax.f32 %v451, %v452
    %v454 = vrot.slane %v453, 2
    %v455 = vmax.f32 %v453, %v454
    %v456 = vrot.slane %v455, 1
    %v457 = vmax.f32 %v455, %v456
    %v458 = vmax.f32 %v432, %v433
    %v459 = vmax.f32 %v458, %v434
    %v460 = vmax.f32 %v459, %v435
    %v461 = vrot.slane %v460, 4
    %v462 = vmax.f32 %v460, %v461
    %v463 = vrot.slane %v462, 2
    %v464 = vmax.f32 %v462, %v463
    %v465 = vrot.slane %v464, 1
    %v466 = vmax.f32 %v464, %v465
    %v467 = vmax.f32 %v436, %v437
    %v468 = vmax.f32 %v467, %v438
    %v469 = vmax.f32 %v468, %v439
    %v470 = vrot.slane %v469, 4
    %v471 = vmax.f32 %v469, %v470
    %v472 = vrot.slane %v471, 2
    %v473 = vmax.f32 %v471, %v472
    %v474 = vrot.slane %v473, 1
    %v475 = vmax.f32 %v473, %v474
    %v476 = vsub.f32 %v424, %v448
    %v477 = vsub.f32 %v425, %v448
    %v478 = vsub.f32 %v426, %v448
    %v479 = vsub.f32 %v427, %v448
    %v480 = vsub.f32 %v428, %v457
    %v481 = vsub.f32 %v429, %v457
    %v482 = vsub.f32 %v430, %v457
    %v483 = vsub.f32 %v431, %v457
    %v484 = vsub.f32 %v432, %v466
    %v485 = vsub.f32 %v433, %v466
    %v486 = vsub.f32 %v434, %v466
    %v487 = vsub.f32 %v435, %v466
    %v488 = vsub.f32 %v436, %v475
    %v489 = vsub.f32 %v437, %v475
    %v490 = vsub.f32 %v438, %v475
    %v491 = vsub.f32 %v439, %v475
    %v492 = vmul.f32 %v476, 1.442695
    %v493 = vpow.pop %v492
    %v494 = vmul.f32 %v477, 1.442695
    %v495 = vpow.pop %v494
    %v496 = vmul.f32 %v478, 1.442695
    %v497 = vpow.pop %v496
    %v498 = vmul.f32 %v479, 1.442695
    %v499 = vpow.pop %v498
    %v500 = vmul.f32 %v480, 1.442695
    %v501 = vpow.pop %v500
    %v502 = vmul.f32 %v481, 1.442695
    %v503 = vpow.pop %v502
    %v504 = vmul.f32 %v482, 1.442695
    %v505 = vpow.pop %v504
    %v506 = vmul.f32 %v483, 1.442695
    %v507 = vpow.pop %v506
    %v508 = vmul.f32 %v484, 1.442695
    %v509 = vpow.pop %v508
    %v510 = vmul.f32 %v485, 1.442695
    %v511 = vpow.pop %v510
    %v512 = vmul.f32 %v486, 1.442695
    %v513 = vpow.pop %v512
    %v514 = vmul.f32 %v487, 1.442695
    %v515 = vpow.pop %v514
    %v516 = vmul.f32 %v488, 1.442695
    %v517 = vpow.pop %v516
    %v518 = vmul.f32 %v489, 1.442695
    %v519 = vpow.pop %v518
    %v520 = vmul.f32 %v490, 1.442695
    %v521 = vpow.pop %v520
    %v522 = vmul.f32 %v491, 1.442695
    %v523 = vpow.pop %v522
    %v524 = vadd.f32 %v493, %v495
    %v525 = vadd.f32 %v524, %v497
    %v526 = vadd.f32 %v525, %v499
    %v527 = vrot.slane %v526, 4
    %v528 = vadd.f32 %v526, %v527
    %v529 = vrot.slane %v528, 2
    %v530 = vadd.f32 %v528, %v529
    %v531 = vrot.slane %v530, 1
    %v532 = vadd.f32 %v530, %v531
    %v533 = vadd.f32 %v501, %v503
    %v534 = vadd.f32 %v533, %v505
    %v535 = vadd.f32 %v534, %v507
    %v536 = vrot.slane %v535, 4
    %v537 = vadd.f32 %v535, %v536
    %v538 = vrot.slane %v537, 2
    %v539 = vadd.f32 %v537, %v538
    %v540 = vrot.slane %v539, 1
    %v541 = vadd.f32 %v539, %v540
    %v542 = vadd.f32 %v509, %v511
    %v543 = vadd.f32 %v542, %v513
    %v544 = vadd.f32 %v543, %v515
    %v545 = vrot.slane %v544, 4
    %v546 = vadd.f32 %v544, %v545
    %v547 = vrot.slane %v546, 2
    %v548 = vadd.f32 %v546, %v547
    %v549 = vrot.slane %v548, 1
    %v550 = vadd.f32 %v548, %v549
    %v551 = vadd.f32 %v517, %v519
    %v552 = vadd.f32 %v551, %v521
    %v553 = vadd.f32 %v552, %v523
    %v554 = vrot.slane %v553, 4
    %v555 = vadd.f32 %v553, %v554
    %v556 = vrot.slane %v555, 2
    %v557 = vadd.f32 %v555, %v556
    %v558 = vrot.slane %v557, 1
    %v559 = vadd.f32 %v557, %v558
    %v560 = vlog2.pop %v532
    %v561 = vmul.f32 %v560, 0.6931472
    %v562 = vlog2.pop %v541
    %v563 = vmul.f32 %v562, 0.6931472
    %v564 = vlog2.pop %v550
    %v565 = vmul.f32 %v564, 0.6931472
    %v566 = vlog2.pop %v559
    %v567 = vmul.f32 %v566, 0.6931472
    %v568 = vsub.f32 %v476, %v561
    %v569 = vsub.f32 %v477, %v561
    %v570 = vsub.f32 %v478, %v561
    %v571 = vsub.f32 %v479, %v561
    %v572 = vsub.f32 %v480, %v563
    %v573 = vsub.f32 %v481, %v563
    %v574 = vsub.f32 %v482, %v563
    %v575 = vsub.f32 %v483, %v563
    %v576 = vsub.f32 %v484, %v565
    %v577 = vsub.f32 %v485, %v565
    %v578 = vsub.f32 %v486, %v565
    %v579 = vsub.f32 %v487, %v565
    %v580 = vsub.f32 %v488, %v567
    %v581 = vsub.f32 %v489, %v567
    %v582 = vsub.f32 %v490, %v567
    %v583 = vsub.f32 %v491, %v567
    %s584 = scalar_lea.vmem [#allocation8], %s374
    %585 = vst [vmem:[%s584] sm:$0xff] %v568
    %586 = vst [vmem:[%s584 + $0x8] sm:$0xff] %v569
    %587 = vst [vmem:[%s584 + $0x10] sm:$0xff] %v570
    %588 = vst [vmem:[%s584 + $0x18] sm:$0xff] %v571
    %589 = vst [vmem:[%s584 + $0x20] sm:$0xff] %v572
    %590 = vst [vmem:[%s584 + $0x28] sm:$0xff] %v573
    %591 = vst [vmem:[%s584 + $0x30] sm:$0xff] %v574
    %592 = vst [vmem:[%s584 + $0x38] sm:$0xff] %v575
    %593 = vst [vmem:[%s584 + $0x40] sm:$0xff] %v576
    %594 = vst [vmem:[%s584 + $0x48] sm:$0xff] %v577
    %595 = vst [vmem:[%s584 + $0x50] sm:$0xff] %v578
    %596 = vst [vmem:[%s584 + $0x58] sm:$0xff] %v579
    %597 = vst [vmem:[%s584 + $0x60] sm:$0xff] %v580
    %598 = vst [vmem:[%s584 + $0x68] sm:$0xff] %v581
    %599 = vst [vmem:[%s584 + $0x70] sm:$0xff] %v582
    %600 = vst [vmem:[%s584 + $0x78] sm:$0xff] %v583
    %v601 = vld [vmem:[#allocation7] sm:$0xff]
    %v602 = vld [vmem:[#allocation7 + $0x8] sm:$0xff]
    %v603 = vld [vmem:[#allocation7 + $0x10] sm:$0xff]
    %v604 = vld [vmem:[#allocation7 + $0x18] sm:$0xff]
    %v605 = vmul.f32 %v568, %v376
    %v606 = vmul.f32 %v569, %v377
    %v607 = vmul.f32 %v570, %v378
    %v608 = vmul.f32 %v571, %v379
    %v609 = vmul.f32 %v572, %v380
    %v610 = vmul.f32 %v573, %v381
    %v611 = vmul.f32 %v574, %v382
    %v612 = vmul.f32 %v575, %v383
    %v613 = vmul.f32 %v576, %v384
    %v614 = vmul.f32 %v577, %v385
    %v615 = vmul.f32 %v578, %v386
    %v616 = vmul.f32 %v579, %v387
    %v617 = vmul.f32 %v580, %v388
    %v618 = vmul.f32 %v581, %v389
    %v619 = vmul.f32 %v582, %v390
    %v620 = vmul.f32 %v583, %v391
    %v621 = vadd.f32 %v605, %v609
    %v622 = vadd.f32 %v621, %v613
    %v623 = vadd.f32 %v622, %v617
    %v624 = vadd.f32 %v606, %v610
    %v625 = vadd.f32 %v624, %v614
    %v626 = vadd.f32 %v625, %v618
    %v627 = vadd.f32 %v607, %v611
    %v628 = vadd.f32 %v627, %v615
    %v629 = vadd.f32 %v628, %v619
    %v630 = vadd.f32 %v608, %v612
    %v631 = vadd.f32 %v630, %v616
    %v632 = vadd.f32 %v631, %v620
    %v633 = vadd.f32 %v601, %v623
    %v634 = vadd.f32 %v602, %v626
    %v635 = vadd.f32 %v603, %v629
    %v636 = vadd.f32 %v604, %v632
    %637 = vst [vmem:[#allocation7] sm:$0xff] %v633
    %638 = vst [vmem:[#allocation7 + $0x8] sm:$0xff] %v634
    %639 = vst [vmem:[#allocation7 + $0x10] sm:$0xff] %v635
    %640 = vst [vmem:[#allocation7 + $0x18] sm:$0xff] %v636
    // Predicated region
    $region22: #{tpu_custom_call.1} parent=1 // pred_check
      %p641 = pneg %p43
    $region23: #{tpu_custom_call.1} parent=1 // pred_check_branch
      %643 = sbr.rel (%p641) target = $region25
    $region24: #{tpu_custom_call.1} parent=1 // pred_region
      %v644 = vld [vmem:[#allocation7] sm:$0xff]
      %v645 = vld [vmem:[#allocation7 + $0x8] sm:$0xff]
      %v646 = vld [vmem:[#allocation7 + $0x10] sm:$0xff]
      %v647 = vld [vmem:[#allocation7 + $0x18] sm:$0xff]
      %v648 = vmul.f32 %v644, 0.11111111
      %v649 = vmul.f32 %v645, 0.11111111
      %v650 = vmul.f32 %v646, 0.11111111
      %v651 = vmul.f32 %v647, 0.11111111
      %652 = vst [vmem:[#allocation7] sm:$0xff] %v648
      %653 = vst [vmem:[#allocation7 + $0x8] sm:$0xff] %v649
      %654 = vst [vmem:[#allocation7 + $0x10] sm:$0xff] %v650
      %655 = vst [vmem:[#allocation7 + $0x18] sm:$0xff] %v651
    $region25: #{tpu_custom_call.1} parent=1 // pred_fallthru
      _
    // Predicated region
    $region26: #{tpu_custom_call.1} parent=1 // pred_check
      _
    $region27: #{tpu_custom_call.1} parent=1 // pred_check_branch
      %657 = sbr.rel (0) target = $region29
    $region28: #{tpu_custom_call.1} parent=1 // pred_region
      %s659 = ssub.s32 512, 512
      %660 = vsyncadd [#allocation4], %s659
      %s661 = sshll.u32 [#allocation7], 4
      %s662 = int_to_ptr.vmem [resolvable:$true] %s661
      %667 = dma.vmem_to_hbm [thread:$0]  %s662, 512, %s2, [#allocation4], 128, 128, 8
    $region29: #{tpu_custom_call.1} parent=1 // pred_fallthru
      _
    // Predicated region
    $region30: #{tpu_custom_call.1} parent=1 // pred_check
      _
    $region31: #{tpu_custom_call.1} parent=1 // pred_check_branch
      %669 = sbr.rel (0) target = $region33
    $region32: #{tpu_custom_call.1} parent=1 // pred_region
      %s671 = ssub.s32 4096, 4096
      %672 = vsyncadd [#allocation9], %s671
      %s673 = sshll.u32 [#allocation8], 4
      %s674 = int_to_ptr.vmem [resolvable:$true] %s673
      %679 = dma.vmem_to_hbm [thread:$0]  %s674, 4096, %s3, [#allocation9], 128, 128, 8
    $region33: #{tpu_custom_call.1} parent=1 // pred_fallthru
      _
    // Predicated region
    $region34: #{tpu_custom_call.1} parent=1 // pred_check
      _
    $region35: #{tpu_custom_call.1} parent=1 // pred_check_branch
      %681 = sbr.rel (0) target = $region37
    $region36: #{tpu_custom_call.1} parent=1 // pred_region
      %682 = dma.done [#allocation4], 512
    $region37: #{tpu_custom_call.1} parent=1 // pred_fallthru
      _
    // Predicated region
    $region38: #{tpu_custom_call.1} parent=1 // pred_check
      _
    $region39: #{tpu_custom_call.1} parent=1 // pred_check_branch
      %684 = sbr.rel (0) target = $region41
    $region40: #{tpu_custom_call.1} parent=1 // pred_region
      %685 = dma.done [#allocation9], 4096
    $region41: #{tpu_custom_call.1} parent=1 // pred_fallthru
      _
    %686 = vsyncpa [#allocation3], 1
    %687 = vsyncpa [#allocation6], 1
    %688 = vsyncpa [#allocation4], 1
    %689 = vsyncpa [#allocation9], 1

</llo_original>
